<compile_context>
chip_gen: v7x
topology: tpu7x:2x2x1
jax: 0.10.0
libtpu: 0.0.40
codegen_flags: <defaults>
</compile_context>

<pallas_src>
import jax
import jax.numpy as jnp
from jax.experimental import pallas as pl
from jax.experimental.pallas import tpu as pltpu

EPS = 1e-5  # torch.nn.LayerNorm default eps


# ----------------------------- helpers ------------------------------------- #
def _round_up(v, m):
    return ((v + m - 1) // m) * m


def _layernorm(x, g, b):
    m = jnp.mean(x, axis=-1, keepdims=True)
    v = jnp.mean((x - m) ** 2, axis=-1, keepdims=True)
    return (x - m) * jax.lax.rsqrt(v + EPS) * g + b


def _vmem_limit_bytes():
    # Size the VMEM budget from the actual chip (v5e/v6e: 128 MiB, v7x: 64 MiB)
    # and leave ~15% headroom for compiler scratch, instead of hard-coding.
    try:
        cap = pltpu.get_tpu_info().vmem_capacity_bytes
        return int(cap * 0.85)
    except Exception:
        return 64 * 1024 * 1024


# ----------------------------- kernels ------------------------------------- #
def patch_embed_kernel(p_ref, w_ref, o_ref):
    # (tm, C*p*p) @ (C*p*p, D) on the MXU; gridded over M = B*P rows.
    # TODO(synk): cast to bf16 for production-size patch embeddings.
    o_ref[...] = jnp.dot(p_ref[...], w_ref[...], preferred_element_type=jnp.float32)


def make_vit_kernel(d_model, n_heads, seq_real, seq_pad, bt, n_layers, forward_head):
    D = d_model
    H = n_heads
    hd = D // H
    N = bt * seq_pad

    def kernel(x_ref,
               lnpre_g_ref, lnpre_b_ref, lnpost_g_ref, lnpost_b_ref, proj_ref,
               ln1g_ref, ln1b_ref, wqkv_ref, bqkv_ref, wo_ref, bo_ref,
               ln2g_ref, ln2b_ref, wfc_ref, bfc_ref, wpr_ref, bpr_ref,
               o_ref, resid_ref):
        l = pl.program_id(1)

        # Layer 0: initialize the VMEM-resident residual stream with ln_pre(tokens).
        @pl.when(l == 0)
        def _():
            tok = x_ref[...].reshape(N, D)
            resid_ref[...] = _layernorm(tok, lnpre_g_ref[...], lnpre_b_ref[...])

        x = resid_ref[...]                                   # (N, D) f32 residual
        h = _layernorm(x, ln1g_ref[...], ln1b_ref[...]).astype(jnp.bfloat16)

        # ---- fused QKV projection: one lane-dense (N, D) @ (D, 3D) bf16 matmul ----
        # (1/sqrt(hd) is pre-folded into the Q columns of wqkv/bqkv in the wrapper.)
        qkv = (jnp.dot(h, wqkv_ref[...], preferred_element_type=jnp.float32)
               + bqkv_ref[...]).astype(jnp.bfloat16)         # (N, 3D)

        # ---- per-head attention, batched over the bt images in the block ----
        # Processing one head at a time keeps the f32 (bt, S, S) score/prob
        # working set at 1/H of the all-heads version (v7x VMEM) and avoids the
        # stack/concat head relayouts; the output projection wo is applied per
        # head as an accumulated rank-hd update (same FLOPs, no concat).
        wo = wo_ref[...]                                     # (D, D) bf16
        if seq_pad != seq_real:
            kmask = jax.lax.broadcasted_iota(jnp.int32, (1, 1, seq_pad), 2) < seq_real

        attn = jnp.zeros((N, D), jnp.float32)
        for hh in range(H):
            qh = qkv[:, hh * hd:(hh + 1) * hd].reshape(bt, seq_pad, hd)
            kh = qkv[:, D + hh * hd:D + (hh + 1) * hd].reshape(bt, seq_pad, hd)
            vh = qkv[:, 2 * D + hh * hd:2 * D + (hh + 1) * hd].reshape(bt, seq_pad, hd)

            s = jnp.einsum('bqd,bkd->bqk', qh, kh,
                           preferred_element_type=jnp.float32)   # (bt, S, S) f32
            if seq_pad != seq_real:                              # mask padded keys
                s = jnp.where(kmask, s, -1e30)
            s = s - jnp.max(s, axis=-1, keepdims=True)
            p = jnp.exp(s)
            p = p * pl.reciprocal(jnp.sum(p, axis=-1, keepdims=True), approx=True)
            a = jnp.einsum('bqk,bkd->bqd', p.astype(jnp.bfloat16), vh,
                           preferred_element_type=jnp.float32)   # (bt, S, hd)
            attn = attn + jnp.dot(a.reshape(N, hd).astype(jnp.bfloat16),
                                  wo[hh * hd:(hh + 1) * hd, :],
                                  preferred_element_type=jnp.float32)

        x = x + attn + bo_ref[...]

        # ---- MLP ----
        h2 = _layernorm(x, ln2g_ref[...], ln2b_ref[...]).astype(jnp.bfloat16)
        m = jnp.dot(h2, wfc_ref[...], preferred_element_type=jnp.float32) + bfc_ref[...]
        m = jax.nn.gelu(m, approximate=False)                # exact GELU (nn.GELU default)
        x = x + jnp.dot(m.astype(jnp.bfloat16), wpr_ref[...],
                        preferred_element_type=jnp.float32) + bpr_ref[...]

        resid_ref[...] = x

        # Last layer: emit only the cls-token head output (no S_pad*D writeback).
        @pl.when(l == n_layers - 1)
        def _():
            cls_rows = [x[i * seq_pad:i * seq_pad + 1, :] for i in range(bt)]
            cls = jnp.concatenate(cls_rows, axis=0)          # (bt, D)
            cls = _layernorm(cls, lnpost_g_ref[...], lnpost_b_ref[...])
            if forward_head:
                o_ref[...] = jnp.dot(cls, proj_ref[...],
                                     preferred_element_type=jnp.float32)
            else:
                o_ref[...] = cls

    return kernel


# ----------------------------- parameters ---------------------------------- #
def init_params(key, *, input_size, patch_size, in_channels, embed_dim,
                n_layers, n_heads, output_dim):
    del n_heads
    scale = embed_dim ** (-0.5)
    num_patches = (input_size // patch_size) ** 2
    keys = jax.random.split(key, 4 + n_layers)

    def nrm(k, shape, s=0.02):
        return (s * jax.random.normal(k, shape)).astype(jnp.float32)

    params = {
        'conv_w': nrm(keys[0], (embed_dim, in_channels, patch_size, patch_size)),
        'cls': (scale * jax.random.normal(keys[1], (embed_dim,))).astype(jnp.float32),
        'pos': (scale * jax.random.normal(keys[2], (num_patches + 1, embed_dim))).astype(jnp.float32),
        'ln_pre_g': jnp.ones((embed_dim,), jnp.float32),
        'ln_pre_b': jnp.zeros((embed_dim,), jnp.float32),
        'ln_post_g': jnp.ones((embed_dim,), jnp.float32),
        'ln_post_b': jnp.zeros((embed_dim,), jnp.float32),
        'proj': (scale * jax.random.normal(keys[3], (embed_dim, output_dim))).astype(jnp.float32),
        'layers': [],
    }
    for li in range(n_layers):
        lk = jax.random.split(keys[4 + li], 6)
        params['layers'].append({
            'ln1_g': jnp.ones((embed_dim,), jnp.float32),
            'ln1_b': jnp.zeros((embed_dim,), jnp.float32),
            'wqkv': nrm(lk[0], (3 * embed_dim, embed_dim)),
            'bqkv': nrm(lk[1], (3 * embed_dim,)),
            'wo': nrm(lk[2], (embed_dim, embed_dim)),
            'bo': nrm(lk[3], (embed_dim,)),
            'ln2_g': jnp.ones((embed_dim,), jnp.float32),
            'ln2_b': jnp.zeros((embed_dim,), jnp.float32),
            'wfc': nrm(lk[4], (4 * embed_dim, embed_dim)),
            'bfc': jnp.zeros((4 * embed_dim,), jnp.float32),
            'wpr': nrm(lk[5], (embed_dim, 4 * embed_dim)),
            'bpr': jnp.zeros((embed_dim,), jnp.float32),
        })
    return params


# ----------------------------- forward (Pallas) ----------------------------- #
def forward(params, x, *, patch_size, n_heads, forward_head=True):
    B, C, Himg, Wimg = x.shape
    p = patch_size
    gh, gw = Himg // p, Wimg // p
    D = params['conv_w'].shape[0]
    P = gh * gw
    L = len(params['layers'])
    H = n_heads
    hd = D // H

    # ---- patch extraction == strided conv, kernel=stride=p, bias=False (glue) ----
    patches = x.reshape(B, C, gh, p, gw, p).transpose(0, 2, 4, 1, 3, 5)
    patches = patches.reshape(B * P, C * p * p)
    w_flat = params['conv_w'].reshape(D, C * p * p).T        # (K, D), lane-dense out

    M, K = patches.shape
    if M >= 512:
        tm = 512
    elif M >= 256:
        tm = 256
    else:
        tm = _round_up(M, 8)
    M_pad = _round_up(M, tm)
    if M_pad != M:
        patches = jnp.pad(patches, ((0, M_pad - M), (0, 0)))

    emb = pl.pallas_call(
        patch_embed_kernel,
        out_shape=jax.ShapeDtypeStruct((M_pad, D), jnp.float32),
        grid_spec=pltpu.PrefetchScalarGridSpec(
            num_scalar_prefetch=0,
            grid=(M_pad // tm,),
            in_specs=[pl.BlockSpec((tm, K), lambda i: (i, 0)),
                      pl.BlockSpec((K, D), lambda i: (0, 0))],
            out_specs=pl.BlockSpec((tm, D), lambda i: (i, 0))),
        compiler_params=pltpu.CompilerParams(dimension_semantics=("parallel",)),
    )(patches, w_flat)[:M].reshape(B, P, D)

    # ---- tokens: [cls] + patch embeddings + positional embedding (glue) ----
    cls = jnp.broadcast_to(params['cls'].reshape(1, 1, D), (B, 1, D))
    tokens = jnp.concatenate([cls, emb], axis=1) + params['pos'][None]
    S = tokens.shape[1]
    # Pad seq to a lane multiple (128) so scores / softmax / stores are lane-dense.
    # Padded keys are masked inside the kernel; only the cls row is read out.
    S_pad = _round_up(S, 128)
    if S_pad != S:
        tokens = jnp.pad(tokens, ((0, 0), (0, S_pad - S), (0, 0)))

    # ---- batch tile: reuse each layer's weights across bt images per grid step ----
    if B >= 8:
        bt = 8                      # TODO(synk): drop to 4 on v7x for D>=768.
        B_pad = _round_up(B, bt)
    else:
        bt = B
        B_pad = B
    if B_pad != B:
        tokens = jnp.pad(tokens, ((0, B_pad - B), (0, 0), (0, 0)))

    # ---- stack per-layer weights along L, pre-transpose to K x N, cast to bf16 ----
    ly = params['layers']
    stk = lambda name: jnp.stack([lp[name] for lp in ly], axis=0)
    scale = hd ** (-0.5)
    qkv_scale = jnp.concatenate([jnp.full((D,), scale, jnp.float32),
                                 jnp.ones((2 * D,), jnp.float32)])   # fold into Q cols

    ln1_g = stk('ln1_g').reshape(L, 1, D)
    ln1_b = stk('ln1_b').reshape(L, 1, D)
    wqkv_t = (jnp.stack([lp['wqkv'].T for lp in ly], axis=0)
              * qkv_scale[None, None, :]).astype(jnp.bfloat16)       # (L, D, 3D)
    bqkv = (stk('bqkv') * qkv_scale[None, :]).reshape(L, 1, 3 * D)
    wo_t = jnp.stack([lp['wo'].T for lp in ly], axis=0).astype(jnp.bfloat16)  # (L, D, D)
    bo = stk('bo').reshape(L, 1, D)
    ln2_g = stk('ln2_g').reshape(L, 1, D)
    ln2_b = stk('ln2_b').reshape(L, 1, D)
    wfc_t = jnp.stack([lp['wfc'].T for lp in ly], axis=0).astype(jnp.bfloat16)  # (L, D, 4D)
    bfc = stk('bfc').reshape(L, 1, 4 * D)
    wpr_t = jnp.stack([lp['wpr'].T for lp in ly], axis=0).astype(jnp.bfloat16)  # (L, 4D, D)
    bpr = stk('bpr').reshape(L, 1, D)

    out_dim = params['proj'].shape[1]
    out_cols = out_dim if forward_head else D

    def wspec(shape):   # per-layer weight block, indexed by the layer axis
        return pl.BlockSpec((None,) + tuple(shape), lambda b, l: (l, 0, 0))

    def cspec(shape):   # constant (ln_pre / ln_post / proj) params
        return pl.BlockSpec(tuple(shape), lambda b, l: (0, 0))

    kern = make_vit_kernel(D, H, S, S_pad, bt, L, forward_head)
    # NOTE: the PyTorch permutes to (S, B, D) and back cancel; we keep (B, S, D).
    out = pl.pallas_call(
        kern,
        out_shape=jax.ShapeDtypeStruct((B_pad, out_cols), jnp.float32),
        grid_spec=pltpu.PrefetchScalarGridSpec(
            num_scalar_prefetch=0,
            grid=(B_pad // bt, L),
            in_specs=[pl.BlockSpec((bt, S_pad, D), lambda b, l: (b, 0, 0)),
                      cspec((1, D)), cspec((1, D)),        # ln_pre
                      cspec((1, D)), cspec((1, D)),        # ln_post
                      cspec((D, out_dim)),                 # proj
                      wspec((1, D)), wspec((1, D)),        # ln1
                      wspec((D, 3 * D)), wspec((1, 3 * D)),
                      wspec((D, D)), wspec((1, D)),
                      wspec((1, D)), wspec((1, D)),        # ln2
                      wspec((D, 4 * D)), wspec((1, 4 * D)),
                      wspec((4 * D, D)), wspec((1, D))],
            out_specs=pl.BlockSpec((bt, out_cols), lambda b, l: (b, 0)),
            scratch_shapes=[pltpu.VMEM((bt * S_pad, D), jnp.float32)]),
        compiler_params=pltpu.CompilerParams(
            dimension_semantics=("parallel", "arbitrary"),
            vmem_limit_bytes=_vmem_limit_bytes()),
    )(tokens,
      params['ln_pre_g'].reshape(1, D), params['ln_pre_b'].reshape(1, D),
      params['ln_post_g'].reshape(1, D), params['ln_post_b'].reshape(1, D),
      params['proj'],
      ln1_g, ln1_b, wqkv_t, bqkv, wo_t, bo, ln2_g, ln2_b, wfc_t, bfc, wpr_t, bpr)

    return out[:B]


# ----------------------------- pure-JAX reference --------------------------- #
def forward_reference(params, x, *, patch_size, n_heads, forward_head=True):
    B, C, Himg, Wimg = x.shape
    p = patch_size
    gh, gw = Himg // p, Wimg // p
    D = params['conv_w'].shape[0]

    patches = x.reshape(B, C, gh, p, gw, p).transpose(0, 2, 4, 1, 3, 5)
    patches = patches.reshape(B, gh * gw, C * p * p)
    emb = patches @ params['conv_w'].reshape(D, -1).T
    cls = jnp.broadcast_to(params['cls'][None, None, :], (B, 1, D))
    t = jnp.concatenate([cls, emb], axis=1) + params['pos'][None]

    def ln(v, g, b):
        m = v.mean(-1, keepdims=True)
        var = ((v - m) ** 2).mean(-1, keepdims=True)
        return (v - m) / jnp.sqrt(var + EPS) * g + b

    t = ln(t, params['ln_pre_g'], params['ln_pre_b'])
    hd = D // n_heads
    for lp in params['layers']:
        h = ln(t, lp['ln1_g'], lp['ln1_b'])
        qkv = h @ lp['wqkv'].T + lp['bqkv']
        q, k, v = qkv[..., :D], qkv[..., D:2 * D], qkv[..., 2 * D:]
        q = q.reshape(B, -1, n_heads, hd).transpose(0, 2, 1, 3) / jnp.sqrt(float(hd))
        k = k.reshape(B, -1, n_heads, hd).transpose(0, 2, 1, 3)
        v = v.reshape(B, -1, n_heads, hd).transpose(0, 2, 1, 3)
        s = jnp.einsum('bhqd,bhkd->bhqk', q, k)
        a = jnp.einsum('bhqk,bhkd->bhqd', jax.nn.softmax(s, axis=-1), v)
        a = a.transpose(0, 2, 1, 3).reshape(B, -1, D)
        t = t + (a @ lp['wo'].T + lp['bo'])
        h2 = ln(t, lp['ln2_g'], lp['ln2_b'])
        m = jax.nn.gelu(h2 @ lp['wfc'].T + lp['bfc'], approximate=False)
        t = t + (m @ lp['wpr'].T + lp['bpr'])
    cls_tok = ln(t[:, 0, :], params['ln_post_g'], params['ln_post_b'])
    if forward_head:
        cls_tok = cls_tok @ params['proj']
    return cls_tok


# ----------------------------- main ----------------------------------------- #
if __name__ == "__main__":
    cfg = dict(input_size=16, patch_size=8, in_channels=3, embed_dim=32,
               n_layers=2, n_heads=4, output_dim=16)
    key = jax.random.PRNGKey(0)
    pkey, xkey = jax.random.split(key)
    params = init_params(pkey, **cfg)
    x = jax.random.normal(
        xkey, (2, cfg['in_channels'], cfg['input_size'], cfg['input_size']),
        dtype=jnp.float32)

    out = forward(params, x, patch_size=cfg['patch_size'], n_heads=cfg['n_heads'])
    out = jax.block_until_ready(out)

    ref = forward_reference(params, x, patch_size=cfg['patch_size'],
                            n_heads=cfg['n_heads'])
    assert out.shape == (2, cfg['output_dim'])
    assert bool(jnp.all(jnp.isfinite(out)))
    # bf16 MXU inputs (f32 accumulation) -> slightly looser tolerance vs f32 reference.
    assert bool(jnp.allclose(out, ref, atol=1e-2, rtol=1e-2))
    print("KERNEL_OK")
</pallas_src>

<mosaic_0001>
module attributes {stable_mosaic.version = 11 : i64} {
  func.func @patch_embed_kernel(%arg0: i32, %arg1: memref<8x192xf32, #tpu.memory_space<vmem>>, %arg2: memref<192x32xf32, #tpu.memory_space<vmem>>, %arg3: memref<8x32xf32, #tpu.memory_space<vmem>>) attributes {dimension_semantics = [#tpu.dimension_semantics<parallel>], iteration_bounds = array<i64: 1>, scalar_prefetch = 0 : i64, scratch_operands = 0 : i64, tpu.core_type = #tpu.core_type<tc>, window_params = [{transform_indices = @transform_0, window_bounds = array<i64: 8, 192>}, {pipeline_mode = #tpu.pipeline_mode<synchronous>, transform_indices = @transform_1, window_bounds = array<i64: 192, 32>}, {transform_indices = @transform_2, window_bounds = array<i64: 8, 32>}]} {
    %c0 = arith.constant 0 : index
    %c0_0 = arith.constant 0 : index
    %0 = vector.load %arg1[%c0, %c0_0] : memref<8x192xf32, #tpu.memory_space<vmem>>, vector<8x192xf32>
    %c0_1 = arith.constant 0 : index
    %c0_2 = arith.constant 0 : index
    %1 = vector.load %arg2[%c0_1, %c0_2] : memref<192x32xf32, #tpu.memory_space<vmem>>, vector<192x32xf32>
    %cst = arith.constant dense<0.000000e+00> : vector<8x32xf32>
    %2 = tpu.matmul %0, %1, %cst {dimension_numbers = #tpu.dot_dimension_numbers<[1], [0], [0], [1], [0, 0, 1, 1], [], []>} : vector<8x192xf32>, vector<192x32xf32>, vector<8x32xf32> -> vector<8x32xf32>
    %c0_3 = arith.constant 0 : index
    %c0_4 = arith.constant 0 : index
    %3 = vector.load %arg3[%c0_3, %c0_4] : memref<8x32xf32, #tpu.memory_space<vmem>>, vector<8x32xf32>
    tpu.vector_store %arg3[%c0_3, %c0_4], %2 {strides = array<i32>} : memref<8x32xf32, #tpu.memory_space<vmem>>, vector<8x32xf32>,
    return
  }
  func.func @transform_0(%arg0: i32) -> (i32, i32) {
    %c0_i32 = arith.constant 0 : i32
    %c0_i32_0 = arith.constant 0 : i32
    return %arg0, %c0_i32 : i32, i32
  }
  func.func @transform_1(%arg0: i32) -> (i32, i32) {
    %c0_i32 = arith.constant 0 : i32
    %c0_i32_0 = arith.constant 0 : i32
    %c0_i32_1 = arith.constant 0 : i32
    return %c0_i32, %c0_i32_0 : i32, i32
  }
  func.func @transform_2(%arg0: i32) -> (i32, i32) {
    %c0_i32 = arith.constant 0 : i32
    %c0_i32_0 = arith.constant 0 : i32
    return %arg0, %c0_i32 : i32, i32
  }
}

</mosaic_0001>

<llo_original>
// kernel: tpu_custom_call.1
$region0: #{tpu_custom_call.1}
  #allocation0 [shape = 'u32[]', space=smem, size = 0x4, offset = 0x4, fixed_abs, tag = 'smem constant byte address 0x4 - core index']
  #allocation1 [shape = 'u32[144,128]{1,0:T(1,128)}', space=vmem, size = 0x12000, scoped, tag = 'internal scratch']
  %s0 = inlined_call_operand.vmem [shape: f32[8,192], index: 0, kind: input, shape index: {}]
  %s1 = inlined_call_operand.vmem [shape: f32[192,32], index: 1, kind: input, shape index: {}]
  %s2 = inlined_call_operand.hbm [shape: f32[8,32], index: 2, kind: output, shape index: {}]
  %s3 = sld [smem:[#allocation0]]
  $region18: #{tpu_custom_call.1} parent=0
    _
  %s5 = ssub.s32 1, %s3
  %s6 = scalar_select 0, %s5, %s3
  $region1: #{tpu_custom_call.1} parent=0
    #allocation2 [shape = 'u8[4096]{0}', space=vmem, size = 0x1000, scoped, tag = 'output window, operand 0, single buffered']
    #allocation3 [shape = 's32[1]{0}', space=sflag, size = 0x4, scoped, tag = 'scoped memory for tpu_custom_call.1']
    %7 = vsyncpa [#allocation3], 0
    // Predicated region
    $region2: #{tpu_custom_call.1} parent=1 // pred_check
      _
    $region3: #{tpu_custom_call.1} parent=1 // pred_check_branch
      %9 = sbr.rel (0) target = $region5
    $region4: #{tpu_custom_call.1} parent=1 // pred_region
      _
    $region5: #{tpu_custom_call.1} parent=1 // pred_fallthru
      _
    // Predicated region
    $region6: #{tpu_custom_call.1} parent=1 // pred_check
      _
    $region7: #{tpu_custom_call.1} parent=1 // pred_check_branch
      %11 = sbr.rel (0) target = $region9
    $region8: #{tpu_custom_call.1} parent=1 // pred_region
      _
    $region9: #{tpu_custom_call.1} parent=1 // pred_fallthru
      _
    %v12 = vld [vmem:[%s0] sm:$0xff]
    %v13 = vld [vmem:[%s0 + $0x8] sm:$0xff]
    %v14 = vld [vmem:[%s1] sm:$0xff]
    %v15 = vld [vmem:[%s1 + $0x8] sm:$0xff]
    %v16 = vld [vmem:[%s1 + $0x10] sm:$0xff]
    %v17 = vld [vmem:[%s1 + $0x18] sm:$0xff]
    %v18 = vld [vmem:[%s1 + $0x20] sm:$0xff]
    %v19 = vld [vmem:[%s1 + $0x28] sm:$0xff]
    %v20 = vld [vmem:[%s1 + $0x30] sm:$0xff]
    %v21 = vld [vmem:[%s1 + $0x38] sm:$0xff]
    %v22 = vld [vmem:[%s1 + $0x40] sm:$0xff]
    %v23 = vld [vmem:[%s1 + $0x48] sm:$0xff]
    %v24 = vld [vmem:[%s1 + $0x50] sm:$0xff]
    %v25 = vld [vmem:[%s1 + $0x58] sm:$0xff]
    %v26 = vld [vmem:[%s1 + $0x60] sm:$0xff]
    %v27 = vld [vmem:[%s1 + $0x68] sm:$0xff]
    %v28 = vld [vmem:[%s1 + $0x70] sm:$0xff]
    %v29 = vld [vmem:[%s1 + $0x78] sm:$0xff]
    %v30 = vld [vmem:[%s1 + $0x80] sm:$0xff]
    %v31 = vld [vmem:[%s1 + $0x88] sm:$0xff]
    %v32 = vld [vmem:[%s1 + $0x90] sm:$0xff]
    %v33 = vld [vmem:[%s1 + $0x98] sm:$0xff]
    %v34 = vld [vmem:[%s1 + $0xa0] sm:$0xff]
    %v35 = vld [vmem:[%s1 + $0xa8] sm:$0xff]
    %v36 = vld [vmem:[%s1 + $0xb0] sm:$0xff]
    %v37 = vld [vmem:[%s1 + $0xb8] sm:$0xff]
    %vm38 = vcmask 523264
    %v40 = vsel %vm38, %v13, 0
    %42 = vmatprep.subr.mxu0 0.0
    %43 = vmatpush1.msra.mxu0 %v14
    %44 = vmatprep.subr.mxu0 0.0
    %45 = vmatpush1.msra.mxu0 %v15
    %46 = vmatprep.subr.mxu0 0.0
    %47 = vmatpush1.msra.mxu0 %v16
    %48 = vmatprep.subr.mxu0 0.0
    %49 = vmatpush1.msra.mxu0 %v17
    %50 = vmatprep.subr.mxu0 0.0
    %51 = vmatpush1.msra.mxu0 %v18
    %52 = vmatprep.subr.mxu0 0.0
    %53 = vmatpush1.msra.mxu0 %v19
    %54 = vmatprep.subr.mxu0 0.0
    %55 = vmatpush1.msra.mxu0 %v20
    %56 = vmatprep.subr.mxu0 0.0
    %57 = vmatpush1.msra.mxu0 %v21
    %58 = vmatprep.subr.mxu0 0.0
    %59 = vmatpush1.msra.mxu0 %v22
    %60 = vmatprep.subr.mxu0 0.0
    %61 = vmatpush1.msra.mxu0 %v23
    %62 = vmatprep.subr.mxu0 0.0
    %63 = vmatpush1.msra.mxu0 %v24
    %64 = vmatprep.subr.mxu0 0.0
    %65 = vmatpush1.msra.mxu0 %v25
    %66 = vmatprep.subr.mxu0 0.0
    %67 = vmatpush1.msra.mxu0 %v26
    %68 = vmatprep.subr.mxu0 0.0
    %69 = vmatpush1.msra.mxu0 %v27
    %70 = vmatprep.subr.mxu0 0.0
    %71 = vmatpush1.msra.mxu0 %v28
    %72 = vmatprep.subr.mxu0 0.0
    %73 = vmatpush1.msra.mxu0 %v29
    %74 = vmatprep.subr.mxu0 0.0
    %75 = vmatpush1.msra.mxu0 %v30
    %76 = vmatprep.subr.mxu0 0.0
    %77 = vmatpush1.msra.mxu0 %v31
    %78 = vmatprep.subr.mxu0 0.0
    %79 = vmatpush1.msra.mxu0 %v32
    %80 = vmatprep.subr.mxu0 0.0
    %81 = vmatpush1.msra.mxu0 %v33
    %82 = vmatprep.subr.mxu0 0.0
    %83 = vmatpush1.msra.mxu0 %v34
    %84 = vmatprep.subr.mxu0 0.0
    %85 = vmatpush1.msra.mxu0 %v35
    %86 = vmatprep.subr.mxu0 0.0
    %87 = vmatpush1.msra.mxu0 %v36
    %88 = vmatprep.subr.mxu0 0.0
    %89 = vmatpush1.msra.mxu0 %v37
    %90 = vmatprep.subr.mxu0 0.0
    %91 = vmatpush1.msra.mxu0 0.0
    %92 = vmatprep.subr.mxu0 0.0
    %93 = vmatpush1.msra.mxu0 0.0
    %94 = vmatprep.subr.mxu0 0.0
    %95 = vmatpush1.msra.mxu0 0.0
    %96 = vmatprep.subr.mxu0 0.0
    %97 = vmatpush1.msra.mxu0 0.0
    %98 = vmatprep.subr.mxu0 0.0
    %99 = vmatpush1.msra.mxu0 0.0
    %100 = vmatprep.subr.mxu0 0.0
    %101 = vmatpush1.msra.mxu0 0.0
    %102 = vmatprep.subr.mxu0 0.0
    %103 = vmatpush1.msra.mxu0 0.0
    %104 = vmatprep.subr.mxu0 0.0
    %105 = vmatpush1.msra.mxu0 0.0
    %106 = vmatprep.mubr.f32.mxu0 %v40
    %107 = vmatmul.mubr.f32.gmra.mrb[0].mxu0 %v12
    %v108 = vpop.f32.mrb[0].mxu0
    %v109 = vadd.f32 0.0, %v108
    %v110 = vpop.f32.mrb[0].mxu0
    %111 = vdwg.mxu0
    %vm112 = vcmask 261120
    %113 = vst.msk [vmem:[#allocation2] sm:$0xff] %vm112, %v109
    // Predicated region
    $region10: #{tpu_custom_call.1} parent=1 // pred_check
      _
    $region11: #{tpu_custom_call.1} parent=1 // pred_check_branch
      %115 = sbr.rel (0) target = $region13
    $region12: #{tpu_custom_call.1} parent=1 // pred_region
      %s117 = ssub.s32 128, 128
      %118 = vsyncadd [#allocation3], %s117
      %s120 = sshll.u32 [#allocation2], 4
      %s121 = int_to_ptr.vmem [resolvable:$true] %s120
      %123 = dma.vmem_to_hbm [thread:$0]  %s121, 128, %s2, [#allocation3]
    $region13: #{tpu_custom_call.1} parent=1 // pred_fallthru
      _
    // Predicated region
    $region14: #{tpu_custom_call.1} parent=1 // pred_check
      _
    $region15: #{tpu_custom_call.1} parent=1 // pred_check_branch
      %125 = sbr.rel (0) target = $region17
    $region16: #{tpu_custom_call.1} parent=1 // pred_region
      %126 = dma.done [#allocation3], 128
    $region17: #{tpu_custom_call.1} parent=1 // pred_fallthru
      _
    %127 = vsyncpa [#allocation3], 1

</llo_original>
